<compile_context>
chip_gen: v5e
topology: v5e:2x2
jax: 0.10.0
libtpu: 0.0.40
codegen_flags: <defaults>
</compile_context>

<pallas_src>
import functools

import jax
import jax.numpy as jnp
from jax.experimental import pallas as pl
from jax.experimental.pallas import tpu as pltpu

IN_FEATURES = 287
HIDDEN = 256
OUT_FEATURES = 1

# Default batch tile. At TB=2048 the per-grid-step overhead (~0.35 us) is well
# amortized against the per-tile x DMA (~2.8 us v5e / ~1.7 us v6e / ~0.75 us v7x).
# Peak VMEM at TB=2048: x (f32, 287->384 lanes) double-buffered ~6.3 MiB
# + bf16 cast copy ~1.5 MiB + h f32 ~2 MiB + weights ~0.15 MiB  =>  ~10 MiB.
# Raise to 4096 on v6e/v7x if desired (~20 MiB, covered by the explicit
# vmem_limit_bytes below).
TILE_B_MAX = 2048
_MIN_TILE = 8
# Once the batch is at least this big, force >= 2 batch tiles so the "parallel"
# grid axis shards across v7x's 2 TensorCores. Costs one extra grid step
# (~0.35 us) on single-TC chips — noise at these batch sizes.
_MEGACORE_SPLIT_MIN = 512
# Explicit scoped-VMEM budget: headroom for TB up to ~4096 (review item),
# safe on every generation (v7x physical VMEM is 64 MiB per TC).
_VMEM_LIMIT_BYTES = 32 << 20


def _cdiv(a, b):
    return -(-a // b)


def _round_up(n, m):
    return ((n + m - 1) // m) * m


def _choose_tiling(B, tile_b):
    """Pick (TB, B_pad): waste <= 7 padded rows per tile, >=2 tiles for large B."""
    num_tiles = _cdiv(B, tile_b)
    if num_tiles == 1 and B >= 2 * _MEGACORE_SPLIT_MIN:
        num_tiles = 2  # let v7x megacore shard the batch grid
    TB = _round_up(_cdiv(B, num_tiles), _MIN_TILE)
    return TB, num_tiles * TB


def mlp_kernel(x_ref, w1_ref, b1_ref, w2_ref, b2_ref, o_ref):
    # x_ref:  [TB, 287] (caller dtype; astype is a no-op if x is already bf16)
    # w1_ref: [287, 256] bf16 (resident)    b1_ref: [1, 256] f32
    # w2_ref: [1, 256]  f32 (the single output column as a row)
    # b2_ref: [1, 1]    f32 scalar in SMEM
    # o_ref:  [TB, 1]   f32
    h = jnp.dot(
        x_ref[...].astype(w1_ref.dtype),
        w1_ref[...],
        preferred_element_type=jnp.float32,   # f32 accumulation on the MXU
    )
    h = jnp.maximum(h + b1_ref[...], 0.0)     # f32 bias + ReLU epilogue (VPU)
    # Dropout(0.5): identity (eval-mode semantics).
    # TODO(synk): training-mode dropout (pltpu.prng_random_bits mask + 2x rescale)
    # not emitted.
    # Second linear (N=1): VPU multiply + XLU lane reduction; free filler slots on
    # an HBM-bound kernel, vs a 1/128-utilized MXU matmul.
    y = jnp.sum(h * w2_ref[...], axis=-1, keepdims=True) + b2_ref[0, 0]
    o_ref[...] = y.astype(o_ref.dtype)


def prepare_params(w1, b1, w2, b2, compute_dtype=jnp.bfloat16):
    """One-time packing of constant parameters. Call once, NOT per step."""
    w1_c = w1.astype(compute_dtype)                        # [287, 256]
    b1_r = b1.reshape(1, HIDDEN).astype(jnp.float32)       # [1, 256]
    w2_r = w2.reshape(1, HIDDEN).astype(jnp.float32)       # [1, 256]
    b2_s = b2.reshape(1, 1).astype(jnp.float32)            # [1, 1]
    return w1_c, b1_r, w2_r, b2_s


@functools.partial(jax.jit, static_argnames=("tile_b",))
def mlp_forward(x, params, tile_b=TILE_B_MAX):
    """x: [B, 287] (f32 or bf16). Returns [B, 1] float32. Dropout = identity (eval)."""
    w1_c, b1_r, w2_r, b2_s = params
    B = x.shape[0]

    TB, B_pad = _choose_tiling(B, tile_b)
    if B_pad != B:
        # Padded rows compute garbage (ReLU(b1)·w2 + b2) and are sliced off below.
        x = jnp.pad(x, ((0, B_pad - B), (0, 0)))
    grid = (B_pad // TB,)

    out = pl.pallas_call(
        mlp_kernel,
        out_shape=jax.ShapeDtypeStruct((B_pad, OUT_FEATURES), jnp.float32),
        grid=grid,
        in_specs=[
            # x: streamed, double-buffered batch tiles; last dim 287 == full array dim.
            pl.BlockSpec((TB, IN_FEATURES), lambda i: (i, 0)),
            # Constant-index weights/biases stay resident across the grid.
            pl.BlockSpec((IN_FEATURES, HIDDEN), lambda i: (0, 0)),
            pl.BlockSpec((1, HIDDEN), lambda i: (0, 0)),
            pl.BlockSpec((1, HIDDEN), lambda i: (0, 0)),
            pl.BlockSpec(memory_space=pltpu.MemorySpace.SMEM),  # b2 scalar
        ],
        # 1-wide output: 4 B/row to HBM; lane-dense rewrite intentionally skipped
        # (profile-gated — output bytes are negligible vs the x read).
        out_specs=pl.BlockSpec((TB, OUT_FEATURES), lambda i: (i, 0)),
        compiler_params=pltpu.CompilerParams(
            dimension_semantics=("parallel",),   # shard batch tiles across TCs (v7x)
            vmem_limit_bytes=_VMEM_LIMIT_BYTES,  # explicit budget for large tiles
        ),
    )(x, w1_c, b1_r, w2_r, b2_s)

    return out if B_pad == B else out[:B]


def init_params(key):
    k1, k2, k3, k4 = jax.random.split(key, 4)
    # PyTorch-style uniform init with bound 1/sqrt(fan_in).
    bound1 = 1.0 / (IN_FEATURES ** 0.5)
    bound2 = 1.0 / (HIDDEN ** 0.5)
    w1 = jax.random.uniform(k1, (IN_FEATURES, HIDDEN), jnp.float32, -bound1, bound1)
    b1 = jax.random.uniform(k2, (HIDDEN,), jnp.float32, -bound1, bound1)
    w2 = jax.random.uniform(k3, (HIDDEN, OUT_FEATURES), jnp.float32, -bound2, bound2)
    b2 = jax.random.uniform(k4, (OUT_FEATURES,), jnp.float32, -bound2, bound2)
    return w1, b1, w2, b2


if __name__ == "__main__":
    key = jax.random.PRNGKey(0)
    k_x, k_p = jax.random.split(key)
    B = 8
    x = jax.random.normal(k_x, (B, IN_FEATURES), jnp.float32)
    w1, b1, w2, b2 = init_params(k_p)

    params = prepare_params(w1, b1, w2, b2)  # one-time packing (hoisted out of hot path)
    out = mlp_forward(x, params)
    out = jax.block_until_ready(out)

    # Pure-JAX f32 reference (eval-mode dropout = identity). The kernel uses bf16
    # MXU inputs with f32 accumulation, so compare with a bf16-appropriate tolerance.
    ref = jnp.maximum(x @ w1 + b1, 0.0) @ w2 + b2
    assert out.shape == (B, OUT_FEATURES)
    assert jnp.allclose(out, ref, atol=2e-2, rtol=2e-2), (
        f"max abs err {jnp.max(jnp.abs(out - ref))}"
    )

    print("KERNEL_OK")
</pallas_src>

<mosaic_0001>
module attributes {stable_mosaic.version = 11 : i64} {
  func.func @mlp_kernel(%arg0: i32, %arg1: memref<8x287xf32, #tpu.memory_space<vmem>>, %arg2: memref<287x256xbf16, #tpu.memory_space<vmem>>, %arg3: memref<1x256xf32, #tpu.memory_space<vmem>>, %arg4: memref<1x256xf32, #tpu.memory_space<vmem>>, %arg5: memref<1x1xf32, #tpu.memory_space<smem>>, %arg6: memref<8x1xf32, #tpu.memory_space<vmem>>) attributes {dimension_semantics = [#tpu.dimension_semantics<parallel>], iteration_bounds = array<i64: 1>, scalar_prefetch = 0 : i64, scratch_operands = 0 : i64, tpu.core_type = #tpu.core_type<tc>, window_params = [{transform_indices = @transform_0, window_bounds = array<i64: 8, 287>}, {pipeline_mode = #tpu.pipeline_mode<synchronous>, transform_indices = @transform_1, window_bounds = array<i64: 287, 256>}, {pipeline_mode = #tpu.pipeline_mode<synchronous>, transform_indices = @transform_2, window_bounds = array<i64: 1, 256>}, {pipeline_mode = #tpu.pipeline_mode<synchronous>, transform_indices = @transform_3, window_bounds = array<i64: 1, 256>}, {transform_indices = @transform_4, window_bounds = array<i64: 1, 1>}, {transform_indices = @transform_5, window_bounds = array<i64: 8, 1>}]} {
    %c0 = arith.constant 0 : index
    %c0_0 = arith.constant 0 : index
    %0 = vector.load %arg1[%c0, %c0_0] : memref<8x287xf32, #tpu.memory_space<vmem>>, vector<8x287xf32>
    %1 = arith.truncf %0 : vector<8x287xf32> to vector<8x287xbf16>
    %c0_1 = arith.constant 0 : index
    %c0_2 = arith.constant 0 : index
    %2 = vector.load %arg2[%c0_1, %c0_2] : memref<287x256xbf16, #tpu.memory_space<vmem>>, vector<287x256xbf16>
    %cst = arith.constant dense<0.000000e+00> : vector<8x256xf32>
    %3 = tpu.matmul %1, %2, %cst {dimension_numbers = #tpu.dot_dimension_numbers<[1], [0], [0], [1], [0, 0, 1, 1], [], []>} : vector<8x287xbf16>, vector<287x256xbf16>, vector<8x256xf32> -> vector<8x256xf32>
    %c0_3 = arith.constant 0 : index
    %c0_4 = arith.constant 0 : index
    %4 = vector.load %arg3[%c0_3, %c0_4] : memref<1x256xf32, #tpu.memory_space<vmem>>, vector<1x256xf32>
    %5 = vector.broadcast %4 : vector<1x256xf32> to vector<8x256xf32>
    %6 = arith.addf %3, %5 : vector<8x256xf32>
    %cst_5 = arith.constant 0.000000e+00 : f32
    %7 = vector.broadcast %cst_5 : f32 to vector<8x256xf32>
    %8 = arith.maximumf %6, %7 : vector<8x256xf32>
    %c0_6 = arith.constant 0 : index
    %c0_7 = arith.constant 0 : index
    %9 = vector.load %arg4[%c0_6, %c0_7] : memref<1x256xf32, #tpu.memory_space<vmem>>, vector<1x256xf32>
    %10 = vector.broadcast %9 : vector<1x256xf32> to vector<8x256xf32>
    %11 = arith.mulf %8, %10 : vector<8x256xf32>
    %cst_8 = arith.constant dense<0.000000e+00> : vector<8xf32>
    %12 = vector.multi_reduction <add>, %11, %cst_8 [1] : vector<8x256xf32> to vector<8xf32>
    %13 = vector.shape_cast %12 : vector<8xf32> to vector<8x1xf32>
    %c0_9 = arith.constant 0 : index
    %c0_10 = arith.constant 0 : index
    %14 = memref.load %arg5[%c0_9, %c0_10] : memref<1x1xf32, #tpu.memory_space<smem>>
    %15 = vector.broadcast %14 : f32 to vector<8x1xf32>
    %16 = arith.addf %13, %15 : vector<8x1xf32>
    %c0_11 = arith.constant 0 : index
    %c0_12 = arith.constant 0 : index
    %17 = vector.load %arg6[%c0_11, %c0_12] : memref<8x1xf32, #tpu.memory_space<vmem>>, vector<8x1xf32>
    tpu.vector_store %arg6[%c0_11, %c0_12], %16 {strides = array<i32>} : memref<8x1xf32, #tpu.memory_space<vmem>>, vector<8x1xf32>,
    return
  }
  func.func @transform_0(%arg0: i32) -> (i32, i32) {
    %c0_i32 = arith.constant 0 : i32
    %c0_i32_0 = arith.constant 0 : i32
    return %arg0, %c0_i32 : i32, i32
  }
  func.func @transform_1(%arg0: i32) -> (i32, i32) {
    %c0_i32 = arith.constant 0 : i32
    %c0_i32_0 = arith.constant 0 : i32
    %c0_i32_1 = arith.constant 0 : i32
    return %c0_i32, %c0_i32_0 : i32, i32
  }
  func.func @transform_2(%arg0: i32) -> (i32, i32) {
    %c0_i32 = arith.constant 0 : i32
    %c0_i32_0 = arith.constant 0 : i32
    %c0_i32_1 = arith.constant 0 : i32
    return %c0_i32, %c0_i32_0 : i32, i32
  }
  func.func @transform_3(%arg0: i32) -> (i32, i32) {
    %c0_i32 = arith.constant 0 : i32
    %c0_i32_0 = arith.constant 0 : i32
    %c0_i32_1 = arith.constant 0 : i32
    return %c0_i32, %c0_i32_0 : i32, i32
  }
  func.func @transform_4(%arg0: i32) -> (i32, i32) {
    %c0_i32 = arith.constant 0 : i32
    %c0_i32_0 = arith.constant 0 : i32
    %c0_i32_1 = arith.constant 0 : i32
    return %c0_i32, %c0_i32_0 : i32, i32
  }
  func.func @transform_5(%arg0: i32) -> (i32, i32) {
    %c0_i32 = arith.constant 0 : i32
    %c0_i32_0 = arith.constant 0 : i32
    return %arg0, %c0_i32 : i32, i32
  }
}

</mosaic_0001>

<llo_original>
// kernel: mlp_forward.1
$region0: #{mlp_forward.1}
  #allocation0 [shape = 'u32[]', space=smem, size = 0x4, offset = 0x4, fixed_abs, tag = 'smem constant byte address 0x4 - core index']
  #allocation1 [shape = 'u32[72,128]{1,0:T(1,128)}', space=vmem, size = 0x9000, scoped, tag = 'internal scratch']
  #allocation2 [shape = 'f32[1,1]{1,0:T(1,128)S(6)}', space=smem, size = 0x200, scoped, tag = 'scoped memory for mlp_forward.1']
  %s0 = inlined_call_operand.hbm [shape: f32[8,287], index: 0, kind: input, shape index: {}]
  %s1 = inlined_call_operand.hbm [shape: bf16[287,256], index: 1, kind: input, shape index: {}]
  %s2 = inlined_call_operand.vmem [shape: f32[1,256], index: 2, kind: input, shape index: {}]
  %s3 = inlined_call_operand.vmem [shape: f32[1,256], index: 3, kind: input, shape index: {}]
  %s4 = inlined_call_operand.<no memory space> [shape: f32[1,1], index: 4, kind: input, shape index: {}]
  %s5 = inlined_call_operand.vmem [shape: f32[8,1], index: 5, kind: output, shape index: {}]
  %s6 = sld [smem:[#allocation0]]
  $region38: #{mlp_forward.1} parent=0
    _
  %s8 = ssub.s32 1, %s6
  %s9 = scalar_select 0, %s8, %s6
  %10 = sst [smem:[#allocation2]] %s4
  $region1: #{mlp_forward.1} parent=0
    #allocation3 [shape = 'u8[12288]{0}', space=vmem, size = 0x3000, scoped, tag = 'input window, operand 0, single buffered']
    #allocation4 [shape = 's32[1]{0}', space=sflag, size = 0x4, scoped, tag = 'scoped memory for mlp_forward.1']
    #allocation5 [shape = 'u8[147456]{0}', space=vmem, size = 0x24000, scoped, tag = 'input window, operand 1, single buffered']
    #allocation6 [shape = 's32[1]{0}', space=sflag, size = 0x4, scoped, tag = 'scoped memory for mlp_forward.1']
    %11 = vsyncpa [#allocation4], 0
    %12 = vsyncpa [#allocation6], 0
    // Predicated region
    $region2: #{mlp_forward.1} parent=1 // pred_check
      _
    $region3: #{mlp_forward.1} parent=1 // pred_check_branch
      %14 = sbr.rel (0) target = $region5
    $region4: #{mlp_forward.1} parent=1 // pred_region
      %16 = vsyncadd [#allocation4], 0
      %s18 = sshll.u32 %s0, 4
      %s19 = int_to_ptr.hbm [resolvable:$true] %s18
      %s20 = sshll.u32 [#allocation3], 4
      %s21 = int_to_ptr.vmem [resolvable:$true] %s20
      %23 = dma.hbm_to_vmem [thread:$0]  %s19, 384, %s21, [#allocation4]
    $region5: #{mlp_forward.1} parent=1 // pred_fallthru
      _
    // Predicated region
    $region6: #{mlp_forward.1} parent=1 // pred_check
      _
    $region7: #{mlp_forward.1} parent=1 // pred_check_branch
      %25 = sbr.rel (0) target = $region9
    $region8: #{mlp_forward.1} parent=1 // pred_region
      %27 = vsyncadd [#allocation6], 0
      %s28 = sshll.u32 %s1, 4
      %s29 = int_to_ptr.hbm [resolvable:$true] %s28
      %s30 = sshll.u32 [#allocation5], 4
      %s31 = int_to_ptr.vmem [resolvable:$true] %s30
      %36 = dma.hbm_to_vmem [thread:$0]  %s29, 4608, %s31, [#allocation6], 128, 128, 8
    $region9: #{mlp_forward.1} parent=1 // pred_fallthru
      _
    // Predicated region
    $region10: #{mlp_forward.1} parent=1 // pred_check
      _
    $region11: #{mlp_forward.1} parent=1 // pred_check_branch
      %38 = sbr.rel (0) target = $region13
    $region12: #{mlp_forward.1} parent=1 // pred_region
      _
    $region13: #{mlp_forward.1} parent=1 // pred_fallthru
      _
    // Predicated region
    $region14: #{mlp_forward.1} parent=1 // pred_check
      _
    $region15: #{mlp_forward.1} parent=1 // pred_check_branch
      %40 = sbr.rel (0) target = $region17
    $region16: #{mlp_forward.1} parent=1 // pred_region
      _
    $region17: #{mlp_forward.1} parent=1 // pred_fallthru
      _
    // Predicated region
    $region18: #{mlp_forward.1} parent=1 // pred_check
      _
    $region19: #{mlp_forward.1} parent=1 // pred_check_branch
      %42 = sbr.rel (0) target = $region21
    $region20: #{mlp_forward.1} parent=1 // pred_region
      _
    $region21: #{mlp_forward.1} parent=1 // pred_fallthru
      _
    // Predicated region
    $region22: #{mlp_forward.1} parent=1 // pred_check
      _
    $region23: #{mlp_forward.1} parent=1 // pred_check_branch
      %44 = sbr.rel (0) target = $region25
    $region24: #{mlp_forward.1} parent=1 // pred_region
      %46 = dma.done [#allocation4], 384
    $region25: #{mlp_forward.1} parent=1 // pred_fallthru
      _
    // Predicated region
    $region26: #{mlp_forward.1} parent=1 // pred_check
      _
    $region27: #{mlp_forward.1} parent=1 // pred_check_branch
      %48 = sbr.rel (0) target = $region29
    $region28: #{mlp_forward.1} parent=1 // pred_region
      %50 = dma.done [#allocation6], 4608
    $region29: #{mlp_forward.1} parent=1 // pred_fallthru
      _
    %v52 = vld [vmem:[#allocation3] sm:$0xff]
    %v53 = vld [vmem:[#allocation3 + $0x8] sm:$0xff]
    %v54 = vld [vmem:[#allocation3 + $0x10] sm:$0xff]
    %v55 = vpack.c.bf16 %v52, %v52
    %v56 = vpack.c.bf16 %v53, %v53
    %v57 = vpack.c.bf16 %v54, %v54
    %v58 = vld [vmem:[#allocation5] sm:$0xff]
    %v59 = vld [vmem:[#allocation5 + $0x8] sm:$0xff]
    %v60 = vld [vmem:[#allocation5 + $0x10] sm:$0xff]
    %v61 = vld [vmem:[#allocation5 + $0x18] sm:$0xff]
    %v62 = vld [vmem:[#allocation5 + $0x20] sm:$0xff]
    %v63 = vld [vmem:[#allocation5 + $0x28] sm:$0xff]
    %v64 = vld [vmem:[#allocation5 + $0x30] sm:$0xff]
    %v65 = vld [vmem:[#allocation5 + $0x38] sm:$0xff]
    %v66 = vld [vmem:[#allocation5 + $0x40] sm:$0xff]
    %v67 = vld [vmem:[#allocation5 + $0x48] sm:$0xff]
    %v68 = vld [vmem:[#allocation5 + $0x50] sm:$0xff]
    %v69 = vld [vmem:[#allocation5 + $0x58] sm:$0xff]
    %v70 = vld [vmem:[#allocation5 + $0x60] sm:$0xff]
    %v71 = vld [vmem:[#allocation5 + $0x68] sm:$0xff]
    %v72 = vld [vmem:[#allocation5 + $0x70] sm:$0xff]
    %v73 = vld [vmem:[#allocation5 + $0x78] sm:$0xff]
    %v74 = vld [vmem:[#allocation5 + $0x80] sm:$0xff]
    %v75 = vld [vmem:[#allocation5 + $0x88] sm:$0xff]
    %v76 = vld [vmem:[#allocation5 + $0x90] sm:$0xff]
    %v77 = vld [vmem:[#allocation5 + $0x98] sm:$0xff]
    %v78 = vld [vmem:[#allocation5 + $0xa0] sm:$0xff]
    %v79 = vld [vmem:[#allocation5 + $0xa8] sm:$0xff]
    %v80 = vld [vmem:[#allocation5 + $0xb0] sm:$0xff]
    %v81 = vld [vmem:[#allocation5 + $0xb8] sm:$0xff]
    %v82 = vld [vmem:[#allocation5 + $0xc0] sm:$0xff]
    %v83 = vld [vmem:[#allocation5 + $0xc8] sm:$0xff]
    %v84 = vld [vmem:[#allocation5 + $0xd0] sm:$0xff]
    %v85 = vld [vmem:[#allocation5 + $0xd8] sm:$0xff]
    %v86 = vld [vmem:[#allocation5 + $0xe0] sm:$0xff]
    %v87 = vld [vmem:[#allocation5 + $0xe8] sm:$0xff]
    %v88 = vld [vmem:[#allocation5 + $0xf0] sm:$0xff]
    %v89 = vld [vmem:[#allocation5 + $0xf8] sm:$0xff]
    %v90 = vld [vmem:[#allocation5 + $0x100] sm:$0xff]
    %v91 = vld [vmem:[#allocation5 + $0x108] sm:$0xff]
    %v92 = vld [vmem:[#allocation5 + $0x110] sm:$0xff]
    %v93 = vld [vmem:[#allocation5 + $0x118] sm:$0xff]
    %v94 = vld [vmem:[%s2] sm:$0x3]
    %v96 = vperm.slane %v94, 0
    %v97 = vperm.slane %v94, 1
    %v136 = vunpack.c.l.b16 %v58
    %v137 = vunpack.c.h.b16 %v58
    %v138 = vunpack.c.l.b16 %v59
    %v139 = vunpack.c.h.b16 %v59
    %v140 = vunpack.c.l.b16 %v60
    %v141 = vunpack.c.h.b16 %v60
    %v142 = vunpack.c.l.b16 %v61
    %v143 = vunpack.c.h.b16 %v61
    %v144 = vunpack.c.l.b16 %v62
    %v145 = vunpack.c.h.b16 %v62
    %v146 = vunpack.c.l.b16 %v63
    %v147 = vunpack.c.h.b16 %v63
    %v148 = vunpack.c.l.b16 %v64
    %v149 = vunpack.c.h.b16 %v64
    %v150 = vunpack.c.l.b16 %v65
    %v151 = vunpack.c.h.b16 %v65
    %v152 = vunpack.c.l.b16 %v66
    %v153 = vunpack.c.h.b16 %v66
    %v154 = vunpack.c.l.b16 %v67
    %v155 = vunpack.c.h.b16 %v67
    %v156 = vunpack.c.l.b16 %v68
    %v157 = vunpack.c.h.b16 %v68
    %v158 = vunpack.c.l.b16 %v69
    %v159 = vunpack.c.h.b16 %v69
    %v160 = vunpack.c.l.b16 %v70
    %v161 = vunpack.c.h.b16 %v70
    %v162 = vunpack.c.l.b16 %v71
    %v163 = vunpack.c.h.b16 %v71
    %v164 = vunpack.c.l.b16 %v72
    %v165 = vunpack.c.h.b16 %v72
    %v166 = vunpack.c.l.b16 %v73
    %v167 = vunpack.c.h.b16 %v73
    %v168 = vunpack.c.l.b16 %v74
    %v169 = vunpack.c.h.b16 %v74
    %v170 = vunpack.c.l.b16 %v75
    %v171 = vunpack.c.h.b16 %v75
    %v172 = vunpack.c.l.b16 %v76
    %v173 = vunpack.c.h.b16 %v76
    %v174 = vunpack.c.l.b16 %v77
    %v175 = vunpack.c.h.b16 %v77
    %v176 = vunpack.c.l.b16 %v78
    %v177 = vunpack.c.h.b16 %v78
    %v178 = vunpack.c.l.b16 %v79
    %v179 = vunpack.c.h.b16 %v79
    %v180 = vunpack.c.l.b16 %v80
    %v181 = vunpack.c.h.b16 %v80
    %v182 = vunpack.c.l.b16 %v81
    %v183 = vunpack.c.h.b16 %v81
    %v184 = vunpack.c.l.b16 %v82
    %v185 = vunpack.c.h.b16 %v82
    %v186 = vunpack.c.l.b16 %v83
    %v187 = vunpack.c.h.b16 %v83
    %v188 = vunpack.c.l.b16 %v84
    %v189 = vunpack.c.h.b16 %v84
    %v190 = vunpack.c.l.b16 %v85
    %v191 = vunpack.c.h.b16 %v85
    %v192 = vunpack.c.l.b16 %v86
    %v193 = vunpack.c.h.b16 %v86
    %v194 = vunpack.c.l.b16 %v87
    %v195 = vunpack.c.h.b16 %v87
    %v196 = vunpack.c.l.b16 %v88
    %v197 = vunpack.c.h.b16 %v88
    %v198 = vunpack.c.l.b16 %v89
    %v199 = vunpack.c.h.b16 %v89
    %v200 = vunpack.c.l.b16 %v90
    %v201 = vunpack.c.h.b16 %v90
    %v202 = vunpack.c.l.b16 %v91
    %v203 = vunpack.c.h.b16 %v91
    %v204 = vunpack.c.l.b16 %v92
    %v205 = vunpack.c.h.b16 %v92
    %v206 = vunpack.c.l.b16 %v93
    %v207 = vunpack.c.h.b16 %v93
    %v208 = vpack.c.b16 %v138, %v136
    %v209 = vpack.c.b16 %v139, %v137
    %v210 = vpack.c.b16 %v142, %v140
    %v211 = vpack.c.b16 %v143, %v141
    %v212 = vpack.c.b16 %v146, %v144
    %v213 = vpack.c.b16 %v147, %v145
    %v214 = vpack.c.b16 %v150, %v148
    %v215 = vpack.c.b16 %v151, %v149
    %v216 = vpack.c.b16 %v154, %v152
    %v217 = vpack.c.b16 %v155, %v153
    %v218 = vpack.c.b16 %v158, %v156
    %v219 = vpack.c.b16 %v159, %v157
    %v220 = vpack.c.b16 %v162, %v160
    %v221 = vpack.c.b16 %v163, %v161
    %v222 = vpack.c.b16 %v166, %v164
    %v223 = vpack.c.b16 %v167, %v165
    %v224 = vpack.c.b16 %v170, %v168
    %v225 = vpack.c.b16 %v171, %v169
    %v226 = vpack.c.b16 %v174, %v172
    %v227 = vpack.c.b16 %v175, %v173
    %v228 = vpack.c.b16 %v178, %v176
    %v229 = vpack.c.b16 %v179, %v177
    %v230 = vpack.c.b16 %v182, %v180
    %v231 = vpack.c.b16 %v183, %v181
    %v232 = vpack.c.b16 %v186, %v184
    %v233 = vpack.c.b16 %v187, %v185
    %v234 = vpack.c.b16 %v190, %v188
    %v235 = vpack.c.b16 %v191, %v189
    %v236 = vpack.c.b16 %v194, %v192
    %v237 = vpack.c.b16 %v195, %v193
    %v238 = vpack.c.b16 %v198, %v196
    %v239 = vpack.c.b16 %v199, %v197
    %v240 = vpack.c.b16 %v202, %v200
    %v241 = vpack.c.b16 %v203, %v201
    %v242 = vpack.c.b16 %v206, %v204
    %v243 = vpack.c.b16 %v207, %v205
    %vm278 = vcmask 252928
    %v280 = vsel %vm278, %v57, 0
    %vm282 = vcmask 1046528
    %vm283 = vcmask 1047552
    %v284 = vsel %vm282, 4294967295, 65535
    %v285 = vsel %vm283, %v284, 0
    %v287 = vand.u32 %v242, %v285
    %v290 = vand.u32 %v243, %v285
    %292 = vmatpush.bf16.msra.mxu0 %v222
    %293 = vmatpush.bf16.msra.mxu0 %v220
    %294 = vmatpush.bf16.msra.mxu0 %v218
    %295 = vmatpush.bf16.msra.mxu0 %v216
    %296 = vmatpush.bf16.msra.mxu0 %v214
    %297 = vmatpush.bf16.msra.mxu0 %v212
    %298 = vmatpush.bf16.msra.mxu0 %v210
    %299 = vmatpush.bf16.msra.mxu0 %v208
    %300 = vmatmul.bf16.gmra.mxu0 %v55
    %v301 = vpop.f32.mrf.mxu0
    %v302 = vadd.f32 %v96, %v301
    %v303 = vpop.f32.mrf.mxu0
    %304 = vdwg.mxu0
    %305 = vmatpush.bf16.msra.mxu0 %v238
    %306 = vmatpush.bf16.msra.mxu0 %v236
    %307 = vmatpush.bf16.msra.mxu0 %v234
    %308 = vmatpush.bf16.msra.mxu0 %v232
    %309 = vmatpush.bf16.msra.mxu0 %v230
    %310 = vmatpush.bf16.msra.mxu0 %v228
    %311 = vmatpush.bf16.msra.mxu0 %v226
    %312 = vmatpush.bf16.msra.mxu0 %v224
    %313 = vmatmul.bf16.gmra.mxu0 %v56
    %v314 = vpop.f32.mrf.mxu0
    %v315 = vadd.f32 %v302, %v314
    %v316 = vpop.f32.mrf.mxu0
    %317 = vdwg.mxu0
    %318 = vmatpush.bf16.msra.mxu0 0
    %319 = vmatpush.bf16.msra.mxu0 0
    %320 = vmatpush.bf16.msra.mxu0 0
    %321 = vmatpush.bf16.msra.mxu0 0
    %322 = vmatpush.bf16.msra.mxu0 0
    %323 = vmatpush.bf16.msra.mxu0 0
    %324 = vmatpush.bf16.msra.mxu0 %v287
    %325 = vmatpush.bf16.msra.mxu0 %v240
    %326 = vmatmul.bf16.gmra.mxu0 %v280
    %v327 = vpop.f32.mrf.mxu0
    %v328 = vadd.f32 %v315, %v327
    %v329 = vpop.f32.mrf.mxu0
    %330 = vdwg.mxu0
    %331 = vmatpush.bf16.msra.mxu0 %v223
    %332 = vmatpush.bf16.msra.mxu0 %v221
    %333 = vmatpush.bf16.msra.mxu0 %v219
    %334 = vmatpush.bf16.msra.mxu0 %v217
    %335 = vmatpush.bf16.msra.mxu0 %v215
    %336 = vmatpush.bf16.msra.mxu0 %v213
    %337 = vmatpush.bf16.msra.mxu0 %v211
    %338 = vmatpush.bf16.msra.mxu0 %v209
    %339 = vmatmul.bf16.gmra.mxu0 %v55
    %v340 = vpop.f32.mrf.mxu0
    %v341 = vadd.f32 %v97, %v340
    %v342 = vpop.f32.mrf.mxu0
    %343 = vdwg.mxu0
    %344 = vmatpush.bf16.msra.mxu0 %v239
    %345 = vmatpush.bf16.msra.mxu0 %v237
    %346 = vmatpush.bf16.msra.mxu0 %v235
    %347 = vmatpush.bf16.msra.mxu0 %v233
    %348 = vmatpush.bf16.msra.mxu0 %v231
    %349 = vmatpush.bf16.msra.mxu0 %v229
    %350 = vmatpush.bf16.msra.mxu0 %v227
    %351 = vmatpush.bf16.msra.mxu0 %v225
    %352 = vmatmul.bf16.gmra.mxu0 %v56
    %v353 = vpop.f32.mrf.mxu0
    %v354 = vadd.f32 %v341, %v353
    %v355 = vpop.f32.mrf.mxu0
    %356 = vdwg.mxu0
    %357 = vmatpush.bf16.msra.mxu0 0
    %358 = vmatpush.bf16.msra.mxu0 0
    %359 = vmatpush.bf16.msra.mxu0 0
    %360 = vmatpush.bf16.msra.mxu0 0
    %361 = vmatpush.bf16.msra.mxu0 0
    %362 = vmatpush.bf16.msra.mxu0 0
    %363 = vmatpush.bf16.msra.mxu0 %v290
    %364 = vmatpush.bf16.msra.mxu0 %v241
    %365 = vmatmul.bf16.gmra.mxu0 %v280
    %v366 = vpop.f32.mrf.mxu0
    %v367 = vadd.f32 %v354, %v366
    %v368 = vpop.f32.mrf.mxu0
    %369 = vdwg.mxu0
    %v370 = vmax.f32 %v328, 0.0
    %v371 = vmax.f32 %v367, 0.0
    %v372 = vld [vmem:[%s3] sm:$0x3]
    %v374 = vperm.slane %v372, 0
    %v375 = vperm.slane %v372, 1
    %v378 = vmul.f32 %v370, %v374
    %v379 = vmul.f32 %v371, %v375
    %v380 = vadd.f32 %v378, %v379
    %381 = vadd.xlane.f32.xlu0 %v380
    %v382 = vpop.xlane.xlu0 %381
    %s383 = sld [smem:[#allocation2]]
    %v384 = vstv %s383
    %v385 = vadd.f32 %v382, %v384
    %vm386 = vcmask 7168
    %387 = vst.msk [vmem:[%s5] sm:$0xff] %vm386, %v385
    // Predicated region
    $region30: #{mlp_forward.1} parent=1 // pred_check
      _
    $region31: #{mlp_forward.1} parent=1 // pred_check_branch
      %389 = sbr.rel (0) target = $region33
    $region32: #{mlp_forward.1} parent=1 // pred_region
      _
    $region33: #{mlp_forward.1} parent=1 // pred_fallthru
      _
    // Predicated region
    $region34: #{mlp_forward.1} parent=1 // pred_check
      _
    $region35: #{mlp_forward.1} parent=1 // pred_check_branch
      %391 = sbr.rel (0) target = $region37
    $region36: #{mlp_forward.1} parent=1 // pred_region
      _
    $region37: #{mlp_forward.1} parent=1 // pred_fallthru
      _
    %392 = vsyncpa [#allocation4], 1
    %393 = vsyncpa [#allocation6], 1

</llo_original>
